<compile_context>
chip_gen: v5e
topology: v5e:2x2
jax: 0.10.0
libtpu: 0.0.40
codegen_flags: <defaults>
</compile_context>

<pallas_src>
import functools

import jax
import jax.numpy as jnp
from jax.experimental import pallas as pl
from jax.experimental.pallas import tpu as pltpu


# --------------------------------------------------------------------------
# Kernels
# --------------------------------------------------------------------------

def _seg_emb_kernel_lane_dense(sep_ref, eos_ref, emb_ref, out_ref):
    """D % 128 == 0 path.

    sep_ref, eos_ref: (TB, 1, 1) int32   per-row sep / eos column index
    emb_ref:          (3, 1, D) float    raw embedding table (resident block)
    out_ref:          (TB, S, D) float   lane-dense (D is a multiple of 128)
    """
    tb, s, _ = out_ref.shape
    pos = jax.lax.broadcasted_iota(jnp.int32, (tb, s, 1), 1)      # seq position
    # Slice rows straight off the ref: no padded (3->8, D) tile materialized,
    # each select operand arrives as a (1, 1, D) lane vector (review #8).
    e0 = emb_ref[0:1, :, :]
    e1 = emb_ref[1:2, :, :]
    e2 = emb_ref[2:3, :, :]
    out_ref[...] = jnp.where(
        pos < sep_ref[...], e1,
        jnp.where(pos < eos_ref[...], e2, e0)).astype(out_ref.dtype)


def _seg_emb_kernel_flat(sep_ref, eos_ref, emb_tiled_ref, out_ref, *, d):
    """Fallback path (D % 128 != 0): flat lane-dense layout.

    sep_ref, eos_ref: (TB, 1) int32
    emb_tiled_ref:    (3, S*D) float   emb_tiled[k, l] == emb[k, l % D]
    out_ref:          (TB, S*D) float
    """
    lane = jax.lax.broadcasted_iota(jnp.int32, out_ref.shape, 1)  # flat lane idx
    # position p = lane // d ; p < sep  <=>  lane < sep * d, so no division.
    sep_l = sep_ref[...] * d                                      # (TB, 1)
    eos_l = eos_ref[...] * d                                      # (TB, 1)
    e0 = emb_tiled_ref[0:1, :]                                    # ref slices (#8)
    e1 = emb_tiled_ref[1:2, :]
    e2 = emb_tiled_ref[2:3, :]
    out_ref[...] = jnp.where(lane < sep_l, e1,
                             jnp.where(lane < eos_l, e2, e0)).astype(out_ref.dtype)


# --------------------------------------------------------------------------
# Wrapper
# --------------------------------------------------------------------------

def _batch_tile(B, row_bytes, target_tile_bytes):
    """Pick the batch-tile size TB."""
    if B * row_bytes <= target_tile_bytes:
        tb = B
    else:
        tb = max(8, int(target_tile_bytes // row_bytes) // 8 * 8)
        tb = min(tb, B)
    # Keep >= 2 grid steps when the batch allows it so the "parallel" batch
    # axis can shard across v7x's two TensorCores (review #3).
    if tb >= B and B >= 16:
        tb = max(8, (B // 2) // 8 * 8)
    return tb


def segment_embedding(x, emb_table, *, out_dtype=None, target_tile_bytes=8 << 20):
    """x: [B, S] int token ids; emb_table: [3, D] float -> [B, S, D]."""
    B, S = x.shape
    V, D = emb_table.shape
    assert V == 3, "segment embedding table must have exactly 3 rows"
    # Static overflow guard for the int32 flat-lane iota / sep*D products.
    assert S * D < 2 ** 31, "S*D too large for int32 lane indexing"
    out_dtype = jnp.dtype(out_dtype or emb_table.dtype)

    # Hoisted per-row positions (matches the PyTorch forward's "exactly one
    # sep / one eos per row" assumption; argmax gives the first occurrence.
    # Rows without a sep/eos token silently behave as sep/eos at column 0).
    sep_pos = jnp.argmax(x == 4, axis=1).astype(jnp.int32)[:, None]   # (B, 1)
    eos_pos = jnp.argmax(x == 2, axis=1).astype(jnp.int32)[:, None]   # (B, 1)

    row_bytes = S * D * out_dtype.itemsize
    tb = _batch_tile(B, row_bytes, target_tile_bytes)
    grid = (pl.cdiv(B, tb),)

    lane_dense_3d = (D % 128 == 0)
    out_tile_bytes = tb * row_bytes
    if lane_dense_3d:
        table_in_bytes = 3 * D * emb_table.dtype.itemsize            # raw table
    else:
        table_in_bytes = 3 * S * D * emb_table.dtype.itemsize        # tiled table

    # Explicit VMEM budget: 2x (double-buffered) output tile, 2x resident table
    # buffers, tiny sep/eos blocks, plus slack.  Only override the compiler
    # default when we actually exceed the most conservative (v5e, 16 MiB) one.
    needed = 2 * out_tile_bytes + 2 * table_in_bytes + 4 * tb * 4 + (2 << 20)
    vmem_limit = int(min(needed, 96 << 20)) if needed > (16 << 20) else None

    compiler_params = pltpu.CompilerParams(
        dimension_semantics=("parallel",),       # batch axis -> megacore / 2 TCs
        vmem_limit_bytes=vmem_limit,
    )
    cost = pl.CostEstimate(
        flops=2 * B * S * D,                     # two selects per output element
        transcendentals=0,
        bytes_accessed=int(B * S * D * out_dtype.itemsize   # dominant writeback
                           + table_in_bytes
                           + 2 * B * 4),
    )

    if lane_dense_3d:
        # ---- Path A: raw (3, D) table, 3-D lane-dense output blocks ----
        sep3 = sep_pos.reshape(B, 1, 1)
        eos3 = eos_pos.reshape(B, 1, 1)
        emb3 = emb_table.reshape(3, 1, D)        # metadata-only reshape
        out = pl.pallas_call(
            _seg_emb_kernel_lane_dense,
            out_shape=jax.ShapeDtypeStruct((B, S, D), out_dtype),
            grid=grid,
            in_specs=[
                pl.BlockSpec((tb, 1, 1), lambda i: (i, 0, 0)),
                pl.BlockSpec((tb, 1, 1), lambda i: (i, 0, 0)),
                pl.BlockSpec((3, 1, D), lambda i: (0, 0, 0)),   # resident table
            ],
            out_specs=pl.BlockSpec((tb, S, D), lambda i: (i, 0, 0)),
            compiler_params=compiler_params,
            cost_estimate=cost,
        )(sep3, eos3, emb3)
        return out

    # ---- Path B: D not a multiple of 128 -> flat [B, S*D] lane-dense layout ----
    SD = S * D
    emb_tiled = jnp.tile(emb_table, (1, S))      # (3, S*D); small for this branch
    out_flat = pl.pallas_call(
        functools.partial(_seg_emb_kernel_flat, d=D),
        out_shape=jax.ShapeDtypeStruct((B, SD), out_dtype),
        grid=grid,
        in_specs=[
            pl.BlockSpec((tb, 1), lambda i: (i, 0)),
            pl.BlockSpec((tb, 1), lambda i: (i, 0)),
            pl.BlockSpec((3, SD), lambda i: (0, 0)),            # resident table
        ],
        out_specs=pl.BlockSpec((tb, SD), lambda i: (i, 0)),
        compiler_params=compiler_params,
        cost_estimate=cost,
    )(sep_pos, eos_pos, emb_tiled)
    return out_flat.reshape(B, S, D)


# --------------------------------------------------------------------------
# Pure-JAX reference (mirrors the PyTorch forward: one sep/eos per row)
# --------------------------------------------------------------------------

def _reference(x, emb_table):
    _, S = x.shape
    pos = jnp.arange(S, dtype=jnp.int32)[None, :]
    sep_pos = jnp.argmax(x == 4, axis=1)[:, None]
    eos_pos = jnp.argmax(x == 2, axis=1)[:, None]
    seg = jnp.where(pos < sep_pos, 1, jnp.where(pos < eos_pos, 2, 0))
    return emb_table[seg]


if __name__ == "__main__":
    key = jax.random.PRNGKey(0)
    k1, k2 = jax.random.split(key)

    # Token ids: each row contains exactly one sep token (4) and one eos token
    # (2), matching the assumption baked into the PyTorch forward.
    x = jnp.array(
        [
            [5, 6, 4, 7, 8, 2, 1, 1],   # sep at 2, eos at 5 -> seg [1,1,2,2,2,0,0,0]
            [9, 4, 3, 2, 0, 0, 0, 0],   # sep at 1, eos at 3 -> seg [1,2,2,0,0,0,0,0]
        ],
        dtype=jnp.int32,
    )
    B, S = x.shape

    # 1) Small / unaligned D (D % 128 != 0): flat lane-dense fallback path.
    D_small = 32
    emb_small = jax.random.normal(k1, (3, D_small), dtype=jnp.float32)
    out_small = jax.block_until_ready(segment_embedding(x, emb_small))
    ref_small = _reference(x, emb_small)
    assert out_small.shape == (B, S, D_small)
    assert jnp.allclose(out_small, ref_small, atol=1e-6), "flat path mismatch"

    # 2) Lane-aligned D (D % 128 == 0): raw-table 3-D lane-dense path.
    D_big = 128
    emb_big = jax.random.normal(k2, (3, D_big), dtype=jnp.float32)
    out_big = jax.block_until_ready(segment_embedding(x, emb_big))
    ref_big = _reference(x, emb_big)
    assert out_big.shape == (B, S, D_big)
    assert jnp.allclose(out_big, ref_big, atol=1e-6), "3-D path mismatch"

    # 3) bf16 output option (halves the dominant HBM writeback).
    out_bf16 = jax.block_until_ready(
        segment_embedding(x, emb_big, out_dtype=jnp.bfloat16))
    assert out_bf16.dtype == jnp.bfloat16
    assert jnp.allclose(out_bf16.astype(jnp.float32), ref_big, atol=2e-2), \
        "bf16 path mismatch"

    print("KERNEL_OK")
</pallas_src>

<mosaic_0001>
module attributes {stable_mosaic.version = 11 : i64} {
  func.func @_seg_emb_kernel_flat(%arg0: i32, %arg1: memref<2x1xi32, #tpu.memory_space<vmem>>, %arg2: memref<2x1xi32, #tpu.memory_space<vmem>>, %arg3: memref<3x256xf32, #tpu.memory_space<vmem>>, %arg4: memref<2x256xf32, #tpu.memory_space<vmem>>) attributes {dimension_semantics = [#tpu.dimension_semantics<parallel>], iteration_bounds = array<i64: 1>, scalar_prefetch = 0 : i64, scratch_operands = 0 : i64, tpu.core_type = #tpu.core_type<tc>, window_params = [{transform_indices = @transform_0, window_bounds = array<i64: 2, 1>}, {transform_indices = @transform_1, window_bounds = array<i64: 2, 1>}, {pipeline_mode = #tpu.pipeline_mode<synchronous>, transform_indices = @transform_2, window_bounds = array<i64: 3, 256>}, {transform_indices = @transform_3, window_bounds = array<i64: 2, 256>}]} {
    %0 = tpu.iota {dimensions = array<i32: 1>} : vector<2x256xi32>
    %c0 = arith.constant 0 : index
    %c0_0 = arith.constant 0 : index
    %1 = vector.load %arg1[%c0, %c0_0] : memref<2x1xi32, #tpu.memory_space<vmem>>, vector<2x1xi32>
    %c32_i32 = arith.constant 32 : i32
    %2 = vector.broadcast %c32_i32 : i32 to vector<2x1xi32>
    %3 = arith.muli %1, %2 : vector<2x1xi32>
    %c0_1 = arith.constant 0 : index
    %c0_2 = arith.constant 0 : index
    %4 = vector.load %arg2[%c0_1, %c0_2] : memref<2x1xi32, #tpu.memory_space<vmem>>, vector<2x1xi32>
    %c32_i32_3 = arith.constant 32 : i32
    %5 = vector.broadcast %c32_i32_3 : i32 to vector<2x1xi32>
    %6 = arith.muli %4, %5 : vector<2x1xi32>
    %c0_4 = arith.constant 0 : index
    %c0_5 = arith.constant 0 : index
    %7 = vector.load %arg3[%c0_4, %c0_5] : memref<3x256xf32, #tpu.memory_space<vmem>>, vector<1x256xf32>
    %c1 = arith.constant 1 : index
    %c0_6 = arith.constant 0 : index
    %8 = vector.load %arg3[%c1, %c0_6] : memref<3x256xf32, #tpu.memory_space<vmem>>, vector<1x256xf32>
    %c2 = arith.constant 2 : index
    %c0_7 = arith.constant 0 : index
    %9 = vector.load %arg3[%c2, %c0_7] : memref<3x256xf32, #tpu.memory_space<vmem>>, vector<1x256xf32>
    %10 = vector.broadcast %3 : vector<2x1xi32> to vector<2x256xi32>
    %11 = arith.cmpi slt, %0, %10 : vector<2x256xi32>
    %12 = vector.broadcast %6 : vector<2x1xi32> to vector<2x256xi32>
    %13 = arith.cmpi slt, %0, %12 : vector<2x256xi32>
    %14 = vector.shape_cast %9 : vector<1x256xf32> to vector<1x256xf32>
    %15 = vector.broadcast %14 : vector<1x256xf32> to vector<2x256xf32>
    %16 = vector.shape_cast %7 : vector<1x256xf32> to vector<1x256xf32>
    %17 = vector.broadcast %16 : vector<1x256xf32> to vector<2x256xf32>
    %18 = arith.select %13, %15, %17 : vector<2x256xi1>, vector<2x256xf32>
    %19 = vector.shape_cast %8 : vector<1x256xf32> to vector<1x256xf32>
    %20 = vector.broadcast %19 : vector<1x256xf32> to vector<2x256xf32>
    %21 = arith.select %11, %20, %18 : vector<2x256xi1>, vector<2x256xf32>
    %c0_8 = arith.constant 0 : index
    %c0_9 = arith.constant 0 : index
    %22 = vector.load %arg4[%c0_8, %c0_9] : memref<2x256xf32, #tpu.memory_space<vmem>>, vector<2x256xf32>
    tpu.vector_store %arg4[%c0_8, %c0_9], %21 {strides = array<i32>} : memref<2x256xf32, #tpu.memory_space<vmem>>, vector<2x256xf32>,
    return
  }
  func.func @transform_0(%arg0: i32) -> (i32, i32) {
    %c0_i32 = arith.constant 0 : i32
    %c0_i32_0 = arith.constant 0 : i32
    return %arg0, %c0_i32 : i32, i32
  }
  func.func @transform_1(%arg0: i32) -> (i32, i32) {
    %c0_i32 = arith.constant 0 : i32
    %c0_i32_0 = arith.constant 0 : i32
    return %arg0, %c0_i32 : i32, i32
  }
  func.func @transform_2(%arg0: i32) -> (i32, i32) {
    %c0_i32 = arith.constant 0 : i32
    %c0_i32_0 = arith.constant 0 : i32
    %c0_i32_1 = arith.constant 0 : i32
    return %c0_i32, %c0_i32_0 : i32, i32
  }
  func.func @transform_3(%arg0: i32) -> (i32, i32) {
    %c0_i32 = arith.constant 0 : i32
    %c0_i32_0 = arith.constant 0 : i32
    return %arg0, %c0_i32 : i32, i32
  }
}

</mosaic_0001>

<llo_original>
// kernel: tpu_custom_call.1
$region0: #{tpu_custom_call.1}
  #allocation0 [shape = 'u32[]', space=smem, size = 0x4, offset = 0x4, fixed_abs, tag = 'smem constant byte address 0x4 - core index']
  #allocation1 [shape = 'u32[72,128]{1,0:T(1,128)}', space=vmem, size = 0x9000, scoped, tag = 'internal scratch']
  %s0 = inlined_call_operand.vmem [shape: s32[2,1], index: 0, kind: input, shape index: {}]
  %s1 = inlined_call_operand.vmem [shape: s32[2,1], index: 1, kind: input, shape index: {}]
  %s2 = inlined_call_operand.hbm [shape: f32[3,256], index: 2, kind: input, shape index: {}]
  %s3 = inlined_call_operand.hbm [shape: f32[2,256], index: 3, kind: output, shape index: {}]
  %s4 = sld [smem:[#allocation0]]
  $region26: #{tpu_custom_call.1} parent=0
    _
  %s6 = ssub.s32 1, %s4
  %s7 = scalar_select 0, %s6, %s4
  $region1: #{tpu_custom_call.1} parent=0
    #allocation2 [shape = 'u8[4096]{0}', space=vmem, size = 0x1000, scoped, tag = 'input window, operand 2, single buffered']
    #allocation3 [shape = 's32[1]{0}', space=sflag, size = 0x4, scoped, tag = 'scoped memory for tpu_custom_call.1']
    #allocation4 [shape = 's32[1]{0}', space=sflag, size = 0x4, scoped, tag = 'scoped memory for tpu_custom_call.1']
    #allocation5 [shape = 'u8[2048]{0}', space=vmem, size = 0x800, scoped, tag = 'output window, operand 0, single buffered']
    %8 = vsyncpa [#allocation3], 0
    %9 = vsyncpa [#allocation4], 0
    // Predicated region
    $region2: #{tpu_custom_call.1} parent=1 // pred_check
      _
    $region3: #{tpu_custom_call.1} parent=1 // pred_check_branch
      %11 = sbr.rel (0) target = $region5
    $region4: #{tpu_custom_call.1} parent=1 // pred_region
      _
    $region5: #{tpu_custom_call.1} parent=1 // pred_fallthru
      _
    // Predicated region
    $region6: #{tpu_custom_call.1} parent=1 // pred_check
      _
    $region7: #{tpu_custom_call.1} parent=1 // pred_check_branch
      %13 = sbr.rel (0) target = $region9
    $region8: #{tpu_custom_call.1} parent=1 // pred_region
      _
    $region9: #{tpu_custom_call.1} parent=1 // pred_fallthru
      _
    // Predicated region
    $region10: #{tpu_custom_call.1} parent=1 // pred_check
      _
    $region11: #{tpu_custom_call.1} parent=1 // pred_check_branch
      %15 = sbr.rel (0) target = $region13
    $region12: #{tpu_custom_call.1} parent=1 // pred_region
      %17 = vsyncadd [#allocation3], 0
      %s19 = sshll.u32 %s2, 4
      %s20 = int_to_ptr.hbm [resolvable:$true] %s19
      %s21 = sshll.u32 [#allocation2], 4
      %s22 = int_to_ptr.vmem [resolvable:$true] %s21
      %24 = dma.hbm_to_vmem [thread:$0]  %s20, 128, %s22, [#allocation3]
    $region13: #{tpu_custom_call.1} parent=1 // pred_fallthru
      _
    // Predicated region
    $region14: #{tpu_custom_call.1} parent=1 // pred_check
      _
    $region15: #{tpu_custom_call.1} parent=1 // pred_check_branch
      %26 = sbr.rel (0) target = $region17
    $region16: #{tpu_custom_call.1} parent=1 // pred_region
      %28 = dma.done [#allocation3], 128
    $region17: #{tpu_custom_call.1} parent=1 // pred_fallthru
      _
    %v29 = vlaneseq
    %v30 = vand.u32 %v29, 127
    %v31 = vadd.s32 %v30, 128
    %v32 = vld [vmem:[%s0] sm:$0x3]
    %v33 = vmul.u32 %v32, 32
    %v34 = vld [vmem:[%s1] sm:$0x3]
    %v35 = vmul.u32 %v34, 32
    %v36 = vld [vmem:[#allocation2] ss:$4 sm:$0x3]
    %s37 = scalar_lea.vmem [#allocation2], 1
    %v38 = vld [vmem:[%s37] ss:$4 sm:$0x3]
    %s39 = scalar_lea.vmem [#allocation2], 2
    %v40 = vld [vmem:[%s39] ss:$4 sm:$0x3]
    %41 = vset.pattern.permute.xlu0 0
    %42 = vperm.xlu0 %41, %v33
    %v43 = vpop.permute.xlu0 %42
    %vm44 = vcmp.lt.s32.totalorder %v30, %v43
    %vm45 = vcmp.lt.s32.totalorder %v31, %v43
    %46 = vset.pattern.permute.xlu0 0
    %47 = vperm.xlu0 %46, %v35
    %v48 = vpop.permute.xlu0 %47
    %vm49 = vcmp.lt.s32.totalorder %v30, %v48
    %vm50 = vcmp.lt.s32.totalorder %v31, %v48
    %v52 = vperm.slane %v40, 0
    %v53 = vperm.slane %v40, 1
    %v57 = vperm.slane %v36, 0
    %v58 = vperm.slane %v36, 1
    %v61 = vsel %vm49, %v52, %v57
    %v62 = vsel %vm50, %v53, %v58
    %v64 = vperm.slane %v38, 0
    %v65 = vperm.slane %v38, 1
    %v68 = vsel %vm44, %v64, %v61
    %v69 = vsel %vm45, %v65, %v62
    %v72 = vrot.slane %v69, 6
    %vm73 = vcmask 1041408
    %v74 = vsel %vm73, %v68, %v72
    %76 = vst [vmem:[#allocation5] sm:$0xf] %v74
    // Predicated region
    $region18: #{tpu_custom_call.1} parent=1 // pred_check
      _
    $region19: #{tpu_custom_call.1} parent=1 // pred_check_branch
      %78 = sbr.rel (0) target = $region21
    $region20: #{tpu_custom_call.1} parent=1 // pred_region
      %80 = vsyncadd [#allocation4], 0
      %s82 = sshll.u32 [#allocation5], 4
      %s83 = int_to_ptr.vmem [resolvable:$true] %s82
      %s84 = sshll.u32 %s3, 4
      %s85 = int_to_ptr.hbm [resolvable:$true] %s84
      %87 = dma.vmem_to_hbm [thread:$0]  %s83, 64, %s85, [#allocation4]
    $region21: #{tpu_custom_call.1} parent=1 // pred_fallthru
      _
    // Predicated region
    $region22: #{tpu_custom_call.1} parent=1 // pred_check
      _
    $region23: #{tpu_custom_call.1} parent=1 // pred_check_branch
      %89 = sbr.rel (0) target = $region25
    $region24: #{tpu_custom_call.1} parent=1 // pred_region
      %91 = dma.done [#allocation4], 64
    $region25: #{tpu_custom_call.1} parent=1 // pred_fallthru
      _
    %92 = vsyncpa [#allocation3], 1
    %93 = vsyncpa [#allocation4], 1

</llo_original>
